<compile_context>
chip_gen: v7x
topology: tpu7x:2x2x1
jax: 0.10.0
libtpu: 0.0.40
codegen_flags: <defaults>
</compile_context>

<pallas_src>
import functools

import jax
import jax.numpy as jnp
from jax import lax
from jax.experimental import pallas as pl
from jax.experimental.pallas import tpu as pltpu


def _round_up(x, m):
    return ((x + m - 1) // m) * m


def _round_down(x, m):
    return (x // m) * m


def _focal_weight(pt_hat, gamma):
    """(1 - pt_hat)**gamma with cheap special cases for integer gamma."""
    q = 1.0 - pt_hat
    if gamma == 2.0:
        return q * q                      # VPU muls instead of EUP pow
    if gamma == 1.0:
        return q
    if gamma == 0.0:
        return jnp.ones_like(q)
    return q ** gamma


# --------------------------------------------------------------------------
# reduction == 'mean' / 'sum'  (factored O(N*C) kernel)
# --------------------------------------------------------------------------
def _focal_reduce_kernel(x_ref, tgt_ref, out_ref, acc_ref, *,
                         gamma, n_actual, tile_n, transposed):
    p = pl.program_id(0)          # size-2 "parallel" axis (v7x dual TC)
    i = pl.program_id(1)          # "arbitrary" reduction axis over N tiles
    n_inner = pl.num_programs(1)

    @pl.when(i == 0)
    def _init():
        acc_ref[...] = jnp.zeros_like(acc_ref)

    x = x_ref[...]
    tgt = tgt_ref[...]

    if transposed:
        # x: (C, tile_n) — lane-dense along samples; tgt: (1, tile_n)
        ids = lax.broadcasted_iota(jnp.int32, x.shape, 0)
        pt = jnp.sum(jnp.where(ids == tgt, x, 0.0), axis=0, keepdims=True)
        sample_idx = lax.broadcasted_iota(jnp.int32, (1, tile_n), 1)
    else:
        # x: (tile_n, C) natural layout (C >= 128, no wrapper transpose)
        ids = lax.broadcasted_iota(jnp.int32, x.shape, 1)
        pt = jnp.sum(jnp.where(ids == tgt, x, 0.0), axis=1, keepdims=True)
        sample_idx = lax.broadcasted_iota(jnp.int32, (tile_n, 1), 0)

    eps = 1e-9
    pt_hat = jnp.clip(pt, eps, 1.0 - eps)
    # double epsilon kept on purpose to match the PyTorch reference exactly
    cross_entropy = -jnp.log(pt_hat + 1e-9)
    per_row = _focal_weight(pt_hat, gamma) * cross_entropy

    # mask ragged tail / phantom tiles via the global sample index
    # (jnp.where so garbage/NaN in out-of-bounds reads cannot propagate)
    gidx = (p * n_inner + i) * tile_n + sample_idx
    acc_ref[...] += jnp.where(gidx < n_actual, per_row, 0.0)

    @pl.when(i == n_inner - 1)
    def _finalize():
        out_ref[...] = jnp.zeros_like(out_ref) + jnp.sum(acc_ref[...])


def _focal_loss_reduce(inputs, targets, alpha_arr, gamma, reduction):
    n, c = inputs.shape
    # Small class counts: a natural (N, C) block is lane-sparse (C/128 of each
    # vreg used), so present a transposed lane-dense (C, N) layout instead.
    # Large C: skip the transpose copy entirely and read (tile_n, C) blocks.
    transposed = c < 128
    budget = 4 << 20   # bytes per x buffer (Pallas double-buffers it)

    if transposed:
        x = inputs.T                                   # (C, N); cheap: C small
        tgt = targets.reshape(1, n)
        if n <= 32768:
            tile_n = n                                 # block == full sample dim
        else:
            tile_n = max(128, min(32768, _round_down(budget // (4 * c), 128)))
        x_block, t_block = (c, tile_n), (1, tile_n)
        acc_shape = (1, tile_n)
    else:
        x = inputs                                     # untouched (N, C)
        tgt = targets.reshape(n, 1)
        c_pad = _round_up(c, 128)
        if n <= 4096:
            tile_n = n
        else:
            tile_n = max(8, min(4096, _round_down(budget // (4 * c_pad), 8)))
        x_block, t_block = (tile_n, c), (tile_n, 1)
        acc_shape = (tile_n, 1)

    n_tiles = pl.cdiv(n, tile_n)
    half = pl.cdiv(n_tiles, 2)   # each "parallel" half handles `half` tiles

    def tile_idx(p, i):
        # phantom tiles (odd n_tiles) re-read a valid block; the in-kernel
        # global-index mask zeroes their contribution.
        return jnp.minimum(p * half + i, n_tiles - 1)

    if transposed:
        x_spec = pl.BlockSpec(x_block, lambda p, i: (0, tile_idx(p, i)))
        t_spec = pl.BlockSpec(t_block, lambda p, i: (0, tile_idx(p, i)))
    else:
        x_spec = pl.BlockSpec(x_block, lambda p, i: (tile_idx(p, i), 0))
        t_spec = pl.BlockSpec(t_block, lambda p, i: (tile_idx(p, i), 0))

    kernel = functools.partial(_focal_reduce_kernel, gamma=float(gamma),
                               n_actual=n, tile_n=tile_n, transposed=transposed)

    partials = pl.pallas_call(
        kernel,
        out_shape=jax.ShapeDtypeStruct((2, 8, 128), jnp.float32),
        grid_spec=pltpu.PrefetchScalarGridSpec(
            num_scalar_prefetch=0,
            grid=(2, half),
            in_specs=[x_spec, t_spec],
            out_specs=pl.BlockSpec((1, 8, 128), lambda p, i: (p, 0, 0)),
            scratch_shapes=[pltpu.VMEM(acc_shape, jnp.float32)],
        ),
        compiler_params=pltpu.CompilerParams(
            dimension_semantics=("parallel", "arbitrary")),
    )(x, tgt)

    per_row_total = partials[0, 0, 0] + partials[1, 0, 0]
    # alpha[targets] factors out of the (N,)x(N,1)->(N,N) broadcast:
    #   sum(outer) == sum(alpha[targets]) * sum(per_row)
    # The O(N) gather+reduce is cheap, so it is done here in XLA and the
    # kernel only does the O(N*C) work.
    alpha_sum = jnp.sum(jnp.take(alpha_arr, targets))
    total = per_row_total * alpha_sum
    if reduction == 'mean':
        total = total / float(n * n)
    return total


# --------------------------------------------------------------------------
# reduction == 'none'  (store-bound (N,N) outer product)
# --------------------------------------------------------------------------
def _outer_product_kernel(pr_ref, ar_ref, out_ref):
    # (tile_m, 1) * (1, tile_l) -> (tile_m, tile_l); pure HBM-store-bound.
    out_ref[...] = (pr_ref[...] * ar_ref[...]).astype(out_ref.dtype)


def _focal_loss_none(inputs, targets, alpha_arr, gamma, out_dtype=jnp.float32):
    n, _ = inputs.shape
    # Per-sample factors are O(N*C)/O(N): hoist them out of the N^2 grid (XLA)
    # so the Pallas kernel never recomputes one-hot/log work per output tile.
    pt = jnp.take_along_axis(inputs, targets.reshape(n, 1), axis=1)      # (N,1)
    pt_hat = jnp.clip(pt, 1e-9, 1.0 - 1e-9)
    cross_entropy = -jnp.log(pt_hat + 1e-9)
    per_row = (_focal_weight(pt_hat, gamma) * cross_entropy).astype(jnp.float32)
    alpha_row = jnp.take(alpha_arr, targets).reshape(1, n)               # (1,N)

    # Large lane-dense output tiles: 512x2048 f32 = 4 MiB/buffer (8 MiB double
    # buffered) fits v5e's 16 MiB scoped VMEM default and v7x's 64 MiB VMEM.
    tile_m = n if n <= 512 else 512
    tile_l = n if n <= 2048 else 2048

    out = pl.pallas_call(
        _outer_product_kernel,
        out_shape=jax.ShapeDtypeStruct((n, n), out_dtype),   # final shape, no slice
        grid_spec=pltpu.PrefetchScalarGridSpec(
            num_scalar_prefetch=0,
            grid=(pl.cdiv(n, tile_m), pl.cdiv(n, tile_l)),
            in_specs=[
                pl.BlockSpec((tile_m, 1), lambda i, j: (i, 0)),
                pl.BlockSpec((1, tile_l), lambda i, j: (0, j)),
            ],
            out_specs=pl.BlockSpec((tile_m, tile_l), lambda i, j: (i, j)),
        ),
        compiler_params=pltpu.CompilerParams(
            dimension_semantics=("parallel", "parallel")),   # both v7x TCs
    )(per_row, alpha_row)
    return out


# --------------------------------------------------------------------------
# public entry point
# --------------------------------------------------------------------------
def focal_loss(inputs, targets, *, gamma=2.0, alpha=None, reduction='mean'):
    """Pallas-TPU FocalLoss forward matching the PyTorch module."""
    inputs = jnp.asarray(inputs, jnp.float32)
    n, c = inputs.shape
    if alpha is None:
        alpha_arr = jnp.ones((c,), jnp.float32) / c
    else:
        alpha_arr = jnp.asarray(alpha, jnp.float32)
        assert alpha_arr.shape == (c,), 'alpha length must equal num_classes'
    targets = jnp.asarray(targets, jnp.int32).reshape(n)

    if reduction in ('mean', 'sum'):
        return _focal_loss_reduce(inputs, targets, alpha_arr, gamma, reduction)
    if reduction == 'none':
        return _focal_loss_none(inputs, targets, alpha_arr, gamma)
    raise ValueError(f"unknown reduction: {reduction}")


# --------------------------------------------------------------------------
# pure-JAX reference (direct port of the PyTorch forward, incl. broadcast quirk)
# --------------------------------------------------------------------------
def _focal_loss_ref(inputs, targets, *, gamma=2.0, alpha=None,
                    reduction='mean'):
    n, c = inputs.shape
    if alpha is None:
        alpha = jnp.ones((c,), jnp.float32) / c
    one_hot = jax.nn.one_hot(targets, c, dtype=jnp.float32)
    pt = jnp.sum(inputs * one_hot, axis=1).reshape(-1, 1)
    pt_hat = jnp.clip(pt, 1e-9, 1.0 - 1e-9)
    ce = -jnp.log(pt_hat + 1e-9)
    fl = alpha[targets] * (1.0 - pt_hat) ** gamma * ce   # (N,)*(N,1) -> (N,N)
    if reduction == 'mean':
        return fl.mean()
    elif reduction == 'sum':
        return fl.sum()
    return fl


if __name__ == "__main__":
    key = jax.random.PRNGKey(0)
    k1, k2, k3, k4 = jax.random.split(key, 4)

    # small classifier shapes: batch=8, num_classes=4 (transposed kernel path)
    N, C = 8, 4
    logits = jax.random.normal(k1, (N, C), dtype=jnp.float32)
    probs = jax.nn.softmax(logits, axis=-1)       # module consumes probabilities
    targets = jax.random.randint(k2, (N,), 0, C, dtype=jnp.int32)

    # 'mean'
    loss_mean = jax.block_until_ready(
        focal_loss(probs, targets, gamma=2.0, reduction='mean'))
    ref_mean = _focal_loss_ref(probs, targets, gamma=2.0, reduction='mean')
    assert jnp.allclose(loss_mean, ref_mean, rtol=1e-5, atol=1e-6), (
        loss_mean, ref_mean)

    # 'sum'
    loss_sum = jax.block_until_ready(
        focal_loss(probs, targets, gamma=2.0, reduction='sum'))
    ref_sum = _focal_loss_ref(probs, targets, gamma=2.0, reduction='sum')
    assert jnp.allclose(loss_sum, ref_sum, rtol=1e-5, atol=1e-5), (
        loss_sum, ref_sum)

    # 'mean' with explicit alpha
    alpha = [0.1, 0.2, 0.3, 0.4]
    loss_a = jax.block_until_ready(
        focal_loss(probs, targets, gamma=2.0, alpha=alpha, reduction='mean'))
    ref_a = _focal_loss_ref(probs, targets, gamma=2.0,
                            alpha=jnp.asarray(alpha, jnp.float32),
                            reduction='mean')
    assert jnp.allclose(loss_a, ref_a, rtol=1e-5, atol=1e-6), (loss_a, ref_a)

    # 'none' (tiled (N,N) outer-product path)
    loss_none = jax.block_until_ready(
        focal_loss(probs, targets, gamma=2.0, reduction='none'))
    ref_none = _focal_loss_ref(probs, targets, gamma=2.0, reduction='none')
    assert loss_none.shape == (N, N)
    assert jnp.allclose(loss_none, ref_none, rtol=1e-5, atol=1e-6)

    # wide-class case exercises the natural-layout (no-transpose) kernel path
    N2, C2 = 16, 128
    logits2 = jax.random.normal(k3, (N2, C2), dtype=jnp.float32)
    probs2 = jax.nn.softmax(logits2, axis=-1)
    targets2 = jax.random.randint(k4, (N2,), 0, C2, dtype=jnp.int32)
    loss2 = jax.block_until_ready(
        focal_loss(probs2, targets2, gamma=2.0, reduction='mean'))
    ref2 = _focal_loss_ref(probs2, targets2, gamma=2.0, reduction='mean')
    assert jnp.allclose(loss2, ref2, rtol=1e-5, atol=1e-6), (loss2, ref2)

    print("KERNEL_OK")
</pallas_src>

<mosaic_0001>
module attributes {stable_mosaic.version = 11 : i64} {
  func.func @_focal_reduce_kernel(%arg0: i32, %arg1: i32, %arg2: memref<4x8xf32, #tpu.memory_space<vmem>>, %arg3: memref<1x8xi32, #tpu.memory_space<vmem>>, %arg4: memref<1x8x128xf32, #tpu.memory_space<vmem>>, %arg5: memref<1x8xf32, #tpu.memory_space<vmem>>) attributes {dimension_semantics = [#tpu.dimension_semantics<parallel>, #tpu.dimension_semantics<arbitrary>], iteration_bounds = array<i64: 2, 1>, scalar_prefetch = 0 : i64, scratch_operands = 1 : i64, tpu.core_type = #tpu.core_type<tc>, window_params = [{transform_indices = @transform_0, window_bounds = array<i64: 4, 8>}, {transform_indices = @transform_1, window_bounds = array<i64: 1, 8>}, {transform_indices = @transform_2, window_bounds = array<i64: 1, 8, 128>}]} {
    %c0_i32 = arith.constant 0 : i32
    %0 = arith.cmpi eq, %arg1, %c0_i32 : i32
    %1 = arith.extui %0 : i1 to i32
    %c0_i32_0 = arith.constant 0 : i32
    %2 = arith.cmpi ne, %1, %c0_i32_0 : i32
    scf.if %2 {
      %cst_18 = arith.constant 0.000000e+00 : f32
      %41 = vector.broadcast %cst_18 : f32 to vector<1x8xf32>
      %c0_19 = arith.constant 0 : index
      %c0_20 = arith.constant 0 : index
      %42 = vector.load %arg5[%c0_19, %c0_20] : memref<1x8xf32, #tpu.memory_space<vmem>>, vector<1x8xf32>
      tpu.vector_store %arg5[%c0_19, %c0_20], %41 {strides = array<i32>} : memref<1x8xf32, #tpu.memory_space<vmem>>, vector<1x8xf32>,
    } else {
    }
    %c0 = arith.constant 0 : index
    %c0_1 = arith.constant 0 : index
    %3 = vector.load %arg2[%c0, %c0_1] : memref<4x8xf32, #tpu.memory_space<vmem>>, vector<4x8xf32>
    %c0_2 = arith.constant 0 : index
    %c0_3 = arith.constant 0 : index
    %4 = vector.load %arg3[%c0_2, %c0_3] : memref<1x8xi32, #tpu.memory_space<vmem>>, vector<1x8xi32>
    %5 = tpu.iota {dimensions = array<i32: 0>} : vector<4x8xi32>
    %6 = vector.broadcast %4 : vector<1x8xi32> to vector<4x8xi32>
    %7 = arith.cmpi eq, %5, %6 : vector<4x8xi32>
    %cst = arith.constant 0.000000e+00 : f32
    %8 = vector.broadcast %cst : f32 to vector<4x8xf32>
    %9 = arith.select %7, %3, %8 : vector<4x8xi1>, vector<4x8xf32>
    %cst_4 = arith.constant dense<0.000000e+00> : vector<8xf32>
    %10 = vector.multi_reduction <add>, %9, %cst_4 [0] : vector<4x8xf32> to vector<8xf32>
    %11 = vector.shape_cast %10 : vector<8xf32> to vector<1x8xf32>
    %12 = tpu.iota {dimensions = array<i32: 1>} : vector<1x8xi32>
    %cst_5 = arith.constant 9.99999971E-10 : f32
    %cst_6 = arith.constant 1.000000e+00 : f32
    %13 = vector.broadcast %cst_5 : f32 to vector<1x8xf32>
    %14 = arith.maximumf %13, %11 : vector<1x8xf32>
    %15 = vector.broadcast %cst_6 : f32 to vector<1x8xf32>
    %16 = arith.minimumf %15, %14 : vector<1x8xf32>
    %cst_7 = arith.constant 9.99999971E-10 : f32
    %17 = vector.broadcast %cst_7 : f32 to vector<1x8xf32>
    %18 = arith.addf %16, %17 : vector<1x8xf32>
    %19 = math.log %18 : vector<1x8xf32>
    %cst_8 = arith.constant 0.000000e+00 : f32
    %20 = vector.broadcast %cst_8 : f32 to vector<1x8xf32>
    %21 = arith.subf %20, %19 : vector<1x8xf32>
    %cst_9 = arith.constant 1.000000e+00 : f32
    %22 = vector.broadcast %cst_9 : f32 to vector<1x8xf32>
    %23 = arith.subf %22, %16 : vector<1x8xf32>
    %24 = arith.mulf %23, %23 : vector<1x8xf32>
    %25 = arith.mulf %24, %21 : vector<1x8xf32>
    %c1_i32 = arith.constant 1 : i32
    %26 = arith.muli %arg0, %c1_i32 : i32
    %27 = arith.addi %26, %arg1 : i32
    %c8_i32 = arith.constant 8 : i32
    %28 = arith.muli %27, %c8_i32 : i32
    %29 = vector.broadcast %28 : i32 to vector<1x8xi32>
    %30 = arith.addi %29, %12 : vector<1x8xi32>
    %c0_10 = arith.constant 0 : index
    %c0_11 = arith.constant 0 : index
    %31 = vector.load %arg5[%c0_10, %c0_11] : memref<1x8xf32, #tpu.memory_space<vmem>>, vector<1x8xf32>
    %c8_i32_12 = arith.constant 8 : i32
    %32 = vector.broadcast %c8_i32_12 : i32 to vector<1x8xi32>
    %33 = arith.cmpi slt, %30, %32 : vector<1x8xi32>
    %cst_13 = arith.constant 0.000000e+00 : f32
    %34 = vector.broadcast %cst_13 : f32 to vector<1x8xf32>
    %35 = arith.select %33, %25, %34 : vector<1x8xi1>, vector<1x8xf32>
    %36 = arith.addf %31, %35 : vector<1x8xf32>
    %c0_14 = arith.constant 0 : index
    %c0_15 = arith.constant 0 : index
    %37 = vector.load %arg5[%c0_14, %c0_15] : memref<1x8xf32, #tpu.memory_space<vmem>>, vector<1x8xf32>
    tpu.vector_store %arg5[%c0_14, %c0_15], %36 {strides = array<i32>} : memref<1x8xf32, #tpu.memory_space<vmem>>, vector<1x8xf32>,
    %c0_i32_16 = arith.constant 0 : i32
    %38 = arith.cmpi eq, %arg1, %c0_i32_16 : i32
    %39 = arith.extui %38 : i1 to i32
    %c0_i32_17 = arith.constant 0 : i32
    %40 = arith.cmpi ne, %39, %c0_i32_17 : i32
    scf.if %40 {
      %cst_18 = arith.constant 0.000000e+00 : f32
      %41 = vector.broadcast %cst_18 : f32 to vector<1x8x128xf32>
      %c0_19 = arith.constant 0 : index
      %c0_20 = arith.constant 0 : index
      %42 = vector.load %arg5[%c0_19, %c0_20] : memref<1x8xf32, #tpu.memory_space<vmem>>, vector<1x8xf32>
      %43 = vector.shape_cast %42 : vector<1x8xf32> to vector<1x1x8xf32>
      %cst_21 = arith.constant dense<0.000000e+00> : vector<1xf32>
      %44 = vector.multi_reduction <add>, %43, %cst_21 [1, 2] : vector<1x1x8xf32> to vector<1xf32>
      %45 = vector.shape_cast %44 : vector<1xf32> to vector<1x1x1xf32>
      %46 = vector.extract %45[0, 0, 0] : f32 from vector<1x1x1xf32>
      %47 = vector.broadcast %46 : f32 to vector<1x8x128xf32>
      %48 = arith.addf %41, %47 : vector<1x8x128xf32>
      %c0_22 = arith.constant 0 : index
      %c0_23 = arith.constant 0 : index
      %c0_24 = arith.constant 0 : index
      %49 = vector.load %arg4[%c0_22, %c0_23, %c0_24] : memref<1x8x128xf32, #tpu.memory_space<vmem>>, vector<1x8x128xf32>
      tpu.vector_store %arg4[%c0_22, %c0_23, %c0_24], %48 {strides = array<i32>} : memref<1x8x128xf32, #tpu.memory_space<vmem>>, vector<1x8x128xf32>,
    } else {
    }
    return
  }
  func.func @transform_0(%arg0: i32, %arg1: i32) -> (i32, i32) {
    %c1_i32 = arith.constant 1 : i32
    %0 = arith.muli %arg0, %c1_i32 : i32
    %1 = arith.addi %0, %arg1 : i32
    %c0_i32 = arith.constant 0 : i32
    %2 = arith.minsi %1, %c0_i32 : i32
    %c0_i32_0 = arith.constant 0 : i32
    %c0_i32_1 = arith.constant 0 : i32
    return %c0_i32_0, %2 : i32, i32
  }
  func.func @transform_1(%arg0: i32, %arg1: i32) -> (i32, i32) {
    %c1_i32 = arith.constant 1 : i32
    %0 = arith.muli %arg0, %c1_i32 : i32
    %1 = arith.addi %0, %arg1 : i32
    %c0_i32 = arith.constant 0 : i32
    %2 = arith.minsi %1, %c0_i32 : i32
    %c0_i32_0 = arith.constant 0 : i32
    %c0_i32_1 = arith.constant 0 : i32
    return %c0_i32_0, %2 : i32, i32
  }
  func.func @transform_2(%arg0: i32, %arg1: i32) -> (i32, i32, i32) {
    %c0_i32 = arith.constant 0 : i32
    %c0_i32_0 = arith.constant 0 : i32
    %c0_i32_1 = arith.constant 0 : i32
    return %arg0, %c0_i32, %c0_i32_0 : i32, i32, i32
  }
}

</mosaic_0001>

<llo_original>
// kernel: tpu_custom_call.1
$region0: #{tpu_custom_call.1}
  #allocation0 [shape = 'u32[]', space=smem, size = 0x4, offset = 0x4, fixed_abs, tag = 'smem constant byte address 0x4 - core index']
  #allocation1 [shape = 'u32[144,128]{1,0:T(1,128)}', space=vmem, size = 0x12000, scoped, tag = 'internal scratch']
  #allocation2 [shape = 'f32[1,8]{1,0:T(1,128)}', space=vmem, size = 0x200, scoped, tag = 'scratch operand']
  %s0 = inlined_call_operand.hbm [shape: f32[4,8], index: 0, kind: input, shape index: {}]
  %s1 = inlined_call_operand.vmem [shape: s32[1,8], index: 1, kind: input, shape index: {}]
  %s2 = inlined_call_operand.hbm [shape: f32[2,8,128], index: 2, kind: output, shape index: {}]
  %s3 = sld [smem:[#allocation0]]
  $region53: #{tpu_custom_call.1} parent=0
    _
  %s5 = ssub.s32 1, %s3
  %s6 = scalar_select 0, %s5, %s3
  $region1: #{tpu_custom_call.1} parent=0
    #allocation3 [shape = 'u8[4096]{0}', space=vmem, size = 0x1000, scoped, tag = 'input window, operand 0']
    #allocation4 [shape = 's32[2]{0}', space=sflag, size = 0x8, scoped, tag = 'scoped memory for tpu_custom_call.1']
    #allocation5 [shape = 's32[2]{0}', space=sflag, size = 0x8, scoped, tag = 'scoped memory for tpu_custom_call.1']
    #allocation6 [shape = 'u8[8192]{0}', space=vmem, size = 0x2000, scoped, tag = 'output window, operand 0']
    %7 = vsyncpa [#allocation4], 0
    %s8 = scalar_lea.sflag [#allocation4], 1
    %9 = vsyncpa %s8, 0
    %10 = vsyncpa [#allocation5], 0
    %s11 = scalar_lea.sflag [#allocation5], 1
    %12 = vsyncpa %s11, 0
    loop: start=0, step=1, limit=4
    $region2: #{tpu_custom_call.1} parent=1 // loop_pre_header
      _
    $region3: #{tpu_custom_call.1} parent=1 // loop_header
      %s14 = sphi 0, %s18
      %p15 = scmp.ge.s32.totalorder %s14, 4
      %s21 = sphi 0, %s33
      %s22 = sphi 0, %s29
      %s23 = sphi 0, %s21
      %s24 = sphi 0, %s22
      %s25 = sphi 0, %s23
      %s26 = sphi 0, %s24
      %s42 = sphi 0, %s44
      %s45 = sphi 0, %s42
      %s46 = sphi 0, %s45
      %s62 = sphi 0, %s46
      %s74 = sphi 0, %s76
      %s77 = sphi 0, %s74
      %s78 = sphi 0, %s77
      %s94 = sphi 0, %s78
      %s100 = sphi 0, %s102
      %s103 = sphi 0, %s100
      %s104 = sphi 0, %s103
      %s120 = sphi 0, %s104
    $region4: #{tpu_custom_call.1} parent=1 // loop_header_branch
      %17 = sbr.rel (%p15) target = $region8
    $region5: #{tpu_custom_call.1} parent=1 // loop_body
      %s19 = ssub.s32 %s14, 1
      %s20 = ssub.s32 %s14, 2
      %s27 = sadd.s32 1, %s22
      %p28 = scmp.ge.s32.totalorder %s27, 1
      %s29 = scalar_select %p28, 0, %s27
      %s30 = sadd.s32 1, %s21
      %s31 = scalar_select %p28, %s30, %s21
      %p32 = scmp.ge.s32.totalorder %s31, 2
      %s33 = scalar_select %p32, 0, %s31
      %s34 = sadd.s32 %s21, %s22
      %p35 = scmp.lt.s32.totalorder %s34, 0
      %s36 = scalar_select %p35, %s34, 0
      %s37 = sadd.s32 %s33, %s29
      %p38 = scmp.lt.s32.totalorder %s37, 0
      %s39 = scalar_select %p38, %s37, 0
      %s40 = ssub.s32 %s36, %s39
      %p41 = scmp.eq.s32.totalorder %s40, 0
      %s43 = sadd.s32 %s42, 1
      %s44 = scalar_select %p41, %s42, %s43
      %p47 = pneg %p41
      %p48 = scmp.eq.s32.totalorder %s14, 1
      %p49 = por %p47, %p48
      %p50 = scmp.ne.s32.totalorder %s42, %s45
      %p51 = scmp.eq.s32.totalorder %s14, 0
      %p52 = por %p50, %p51
      %p53 = scmp.ne.s32.totalorder %s42, %s45
      %p54 = scmp.eq.s32.totalorder %s19, 1
      %p55 = por %p53, %p54
      %p56 = scmp.ne.s32.totalorder %s45, %s46
      %p57 = scmp.eq.s32.totalorder %s19, 0
      %p58 = por %p56, %p57
      %p59 = scmp.ne.s32.totalorder %s45, %s46
      %p60 = scmp.eq.s32.totalorder %s20, 1
      %p61 = por %p59, %p60
      %p63 = scmp.ne.s32.totalorder %s46, %s62
      %p64 = scmp.eq.s32.totalorder %s20, 0
      %p65 = por %p63, %p64
      %s66 = sadd.s32 %s21, %s22
      %p67 = scmp.lt.s32.totalorder %s66, 0
      %s68 = scalar_select %p67, %s66, 0
      %s69 = sadd.s32 %s33, %s29
      %p70 = scmp.lt.s32.totalorder %s69, 0
      %s71 = scalar_select %p70, %s69, 0
      %s72 = ssub.s32 %s68, %s71
      %p73 = scmp.eq.s32.totalorder %s72, 0
      %s75 = sadd.s32 %s74, 1
      %s76 = scalar_select %p73, %s74, %s75
      %p79 = pneg %p73
      %p80 = scmp.eq.s32.totalorder %s14, 1
      %p81 = por %p79, %p80
      %p82 = scmp.ne.s32.totalorder %s74, %s77
      %p83 = scmp.eq.s32.totalorder %s14, 0
      %p84 = por %p82, %p83
      %p85 = scmp.ne.s32.totalorder %s74, %s77
      %p86 = scmp.eq.s32.totalorder %s19, 1
      %p87 = por %p85, %p86
      %p88 = scmp.ne.s32.totalorder %s77, %s78
      %p89 = scmp.eq.s32.totalorder %s19, 0
      %p90 = por %p88, %p89
      %p91 = scmp.ne.s32.totalorder %s77, %s78
      %p92 = scmp.eq.s32.totalorder %s20, 1
      %p93 = por %p91, %p92
      %p95 = scmp.ne.s32.totalorder %s78, %s94
      %p96 = scmp.eq.s32.totalorder %s20, 0
      %p97 = por %p95, %p96
      %s98 = ssub.s32 %s21, %s33
      %p99 = scmp.eq.s32.totalorder %s98, 0
      %s101 = sadd.s32 %s100, 1
      %s102 = scalar_select %p99, %s100, %s101
      %p105 = pneg %p99
      %p106 = scmp.eq.s32.totalorder %s14, 1
      %p107 = por %p105, %p106
      %p108 = scmp.ne.s32.totalorder %s100, %s103
      %p109 = scmp.eq.s32.totalorder %s14, 0
      %p110 = por %p108, %p109
      %p111 = scmp.ne.s32.totalorder %s100, %s103
      %p112 = scmp.eq.s32.totalorder %s19, 1
      %p113 = por %p111, %p112
      %p114 = scmp.ne.s32.totalorder %s103, %s104
      %p115 = scmp.eq.s32.totalorder %s19, 0
      %p116 = por %p114, %p115
      %p117 = scmp.ne.s32.totalorder %s103, %s104
      %p118 = scmp.eq.s32.totalorder %s20, 1
      %p119 = por %p117, %p118
      %p121 = scmp.ne.s32.totalorder %s104, %s120
      %p122 = scmp.eq.s32.totalorder %s20, 0
      %p123 = por %p121, %p122
      %p124 = scmp.le.s32.totalorder 1, %s14
      %p125 = scmp.lt.s32.totalorder %s14, 3
      %p126 = pnand %p124, %p125
      %p127 = pneg %p126
      // Predicated region
      $region9: #{tpu_custom_call.1} parent=5 // pred_check
        _
      $region10: #{tpu_custom_call.1} parent=5 // pred_check_branch
        %129 = sbr.rel (%p126) target = $region12
      $region11: #{tpu_custom_call.1} parent=5 // pred_region
        %s130 = ssub.s32 %s14, 1
      $region12: #{tpu_custom_call.1} parent=5 // pred_fallthru
        _
      %p131 = scmp.lt.s32.totalorder %s14, 2
      // Predicated region
      $region13: #{tpu_custom_call.1} parent=5 // pred_check
        %p132 = pneg %p131
      $region14: #{tpu_custom_call.1} parent=5 // pred_check_branch
        %134 = sbr.rel (%p132) target = $region16
      $region15: #{tpu_custom_call.1} parent=5 // pred_region
        // Predicated region
        $region17: #{tpu_custom_call.1} parent=15 // pred_check
          %p135 = pneg %p52
        $region18: #{tpu_custom_call.1} parent=15 // pred_check_branch
          %137 = sbr.rel (%p135) target = $region20
        $region19: #{tpu_custom_call.1} parent=15 // pred_region
          %s138 = sand.u32 %s42, 1
          %s139 = scalar_lea.sflag [#allocation4], %s138
          %s140 = sand.u32 %s42, 1
          %s141 = smul.addr %s140, 4
          %s142 = scalar_lea.vmem [#allocation3], %s141
          %s143 = sadd.s32 %s21, %s22
          %p144 = scmp.lt.s32.totalorder %s143, 0
          %s145 = scalar_select %p144, %s143, 0
          %s147 = ssub.s32 64, 64
          %148 = vsyncadd %s139, %s147
          %s149 = smul.addr %s145, 64
          %s150 = scalar_lea.hbm %s0, %s149
          %s152 = sshll.u32 %s142, 4
          %s153 = int_to_ptr.vmem [resolvable:$true] %s152
          %155 = dma.hbm_to_vmem [thread:$0]  %s150, 64, %s153, %s139
        $region20: #{tpu_custom_call.1} parent=15 // pred_fallthru
          _
        // Predicated region
        $region21: #{tpu_custom_call.1} parent=15 // pred_check
          %p156 = pneg %p84
        $region22: #{tpu_custom_call.1} parent=15 // pred_check_branch
          %158 = sbr.rel (%p156) target = $region24
        $region23: #{tpu_custom_call.1} parent=15 // pred_region
          %s159 = sadd.s32 %s21, %s22
          %p160 = scmp.lt.s32.totalorder %s159, 0
          %s161 = scalar_select %p160, %s159, 0
          %p162 = scmp.lt.s32.totalorder %s161, 0
          %s163 = scalar_select %p162, %s161, 0
          %s164 = scalar_lea.vmem %s1, %s163
          %s165 = sadd.s32 %s21, %s22
          %p166 = scmp.lt.s32.totalorder %s165, 0
          %s167 = scalar_select %p166, %s165, 0
        $region24: #{tpu_custom_call.1} parent=15 // pred_fallthru
          _
      $region16: #{tpu_custom_call.1} parent=5 // pred_fallthru
        _
      %p168 = scmp.le.s32.totalorder 1, %s14
      %p169 = scmp.lt.s32.totalorder %s14, 3
      %p170 = pnand %p168, %p169
      %p171 = pneg %p170
      // Predicated region
      $region25: #{tpu_custom_call.1} parent=5 // pred_check
        _
      $region26: #{tpu_custom_call.1} parent=5 // pred_check_branch
        %173 = sbr.rel (%p170) target = $region28
      $region27: #{tpu_custom_call.1} parent=5 // pred_region
        %s174 = ssub.s32 %s14, 1
        %s175 = sand.u32 %s45, 1
        %s176 = scalar_lea.sflag [#allocation4], %s175
        %s177 = sand.u32 %s45, 1
        %s178 = smul.addr %s177, 4
        %s179 = scalar_lea.vmem [#allocation3], %s178
        // Predicated region
        $region29: #{tpu_custom_call.1} parent=27 // pred_check
          %p180 = pneg %p58
        $region30: #{tpu_custom_call.1} parent=27 // pred_check_branch
          %182 = sbr.rel (%p180) target = $region32
        $region31: #{tpu_custom_call.1} parent=27 // pred_region
          %183 = dma.done %s176, 64
        $region32: #{tpu_custom_call.1} parent=27 // pred_fallthru
          _
        %s184 = sand.u32 %s45, 1
        %s185 = scalar_lea.sflag [#allocation4], %s184
        %s186 = sand.u32 %s45, 1
        %s187 = smul.addr %s186, 4
        %s188 = scalar_lea.vmem [#allocation3], %s187
        %p189 = pneg %p58
        %p190 = pneg %p55
        %s191 = sadd.s32 %s23, %s24
        %p192 = scmp.lt.s32.totalorder %s191, 0
        %s193 = scalar_select %p192, %s191, 0
        %p194 = scmp.lt.s32.totalorder %s193, 0
        %s195 = scalar_select %p194, %s193, 0
        %s196 = scalar_lea.vmem %s1, %s195
        %p197 = pneg %p90
        %p198 = pneg %p87
        %p199 = pneg %p116
        %p200 = pneg %p113
        %s201 = sand.u32 %s103, 1
        %s202 = scalar_lea.sflag [#allocation5], %s201
        %s203 = sand.u32 %s103, 1
        %s204 = smul.addr %s203, 8
        %s205 = scalar_lea.vmem [#allocation6], %s204
        %s206 = sadd.s32 %s23, %s24
        %p207 = scmp.lt.s32.totalorder %s206, 0
        %s208 = scalar_select %p207, %s206, 0
        %s209 = sadd.s32 %s23, %s24
        %p210 = scmp.lt.s32.totalorder %s209, 0
        %s211 = scalar_select %p210, %s209, 0
        %p212 = scmp.lt.s32.totalorder %s211, 0
        %s213 = scalar_select %p212, %s211, 0
        %s214 = scalar_lea.vmem %s1, %s213
        %s215 = sadd.s32 %s23, %s24
        %p216 = scmp.lt.s32.totalorder %s215, 0
        %s217 = scalar_select %p216, %s215, 0
        %p218 = scmp.eq.s32.totalorder %s24, 0
        // Predicated region
        $region33: #{tpu_custom_call.1} parent=27 // pred_check
          %p219 = pneg %p218
        $region34: #{tpu_custom_call.1} parent=27 // pred_check_branch
          %221 = sbr.rel (%p219) target = $region36
        $region35: #{tpu_custom_call.1} parent=27 // pred_region
          %vm222 = vcmask 57344
          %223 = vst.msk [vmem:[#allocation2] sm:$0x1] %vm222, 0.0
        $region36: #{tpu_custom_call.1} parent=27 // pred_fallthru
          _
        %v224 = vld [vmem:[%s179] sm:$0xf]
        %v225 = vld [vmem:[%s214] sm:$0x1]
        %v226 = vlaneseq
        %v227 = vshrl.u32 %v226, 7
        %v228 = vlaneseq
        %v229 = vshrl.u32 %v228, 7
        %v230 = vsub.s32 0, %v229
        %v231 = vrot.slane %v225, %v230
        %vm232 = vcmp.eq.s32.totalorder %v227, %v231
        %v233 = vsel %vm232, %v224, 0.0
        %vm234 = vcmask 60416
        %v235 = vsel %vm234, %v233, 0.0
        %v236 = vrot.slane %v235, 4
        %v237 = vadd.f32 %v235, %v236
        %v238 = vrot.slane %v237, 2
        %v239 = vadd.f32 %v237, %v238
        %v240 = vrot.slane %v239, 1
        %v241 = vadd.f32 %v239, %v240
        %v242 = vlaneseq
        %v243 = vand.u32 %v242, 127
        %v244 = vmax.f32 %v241, 1e-09
        %v245 = vmin.f32 %v244, 1.0
        %v246 = vadd.f32 %v245, 1e-09
        %v247 = vlog2.pop %v246
        %v248 = vmul.f32 %v247, 0.6931472
        %v249 = vsub.f32 0.0, %v248
        %v250 = vsub.f32 1.0, %v245
        %v251 = vmul.f32 %v250, %v250
        %v252 = vmul.f32 %v251, %v249
        %s253 = sadd.s32 %s23, %s24
        %s254 = smul.u32 %s253, 8
        %v255 = vstv %s254
        %v256 = vadd.s32 %v255, %v243
        %v257 = vld [vmem:[#allocation2] sm:$0x1]
        %vm258 = vcmp.lt.s32.totalorder %v256, 8
        %v259 = vsel %vm258, %v252, 0.0
        %v260 = vadd.f32 %v257, %v259
        %vm261 = vcmask 57344
        %262 = vst.msk [vmem:[#allocation2] sm:$0x1] %vm261, %v260
        // Predicated region
        $region37: #{tpu_custom_call.1} parent=27 // pred_check
          %p263 = pneg %p218
        $region38: #{tpu_custom_call.1} parent=27 // pred_check_branch
          %265 = sbr.rel (%p263) target = $region40
        $region39: #{tpu_custom_call.1} parent=27 // pred_region
          %v266 = vld [vmem:[#allocation2] sm:$0x1]
          %v267 = vsel %vm261, %v266, 0.0
          %268 = vadd.xlane.f32.xlu0 %v267
          %v269 = vpop.xlane.xlu0 %268
          %v270 = vrot.slane %v269, 4
          %v271 = vadd.f32 %v269, %v270
          %v272 = vrot.slane %v271, 2
          %v273 = vadd.f32 %v271, %v272
          %v274 = vrot.slane %v273, 1
          %v275 = vadd.f32 %v273, %v274
          %s276 = vtos %v275
          %v277 = vstv %s276
          %v278 = vadd.f32 %v277, 0.0
          %279 = vst [vmem:[%s205] sm:$0xff] %v278
        $region40: #{tpu_custom_call.1} parent=27 // pred_fallthru
          _
        %s280 = sand.u32 %s103, 1
        %s281 = scalar_lea.sflag [#allocation5], %s280
        %s282 = sand.u32 %s103, 1
        %s283 = smul.addr %s282, 8
        %s284 = scalar_lea.vmem [#allocation6], %s283
        // Predicated region
        $region41: #{tpu_custom_call.1} parent=27 // pred_check
          %p285 = pneg %p113
        $region42: #{tpu_custom_call.1} parent=27 // pred_check_branch
          %287 = sbr.rel (%p285) target = $region44
        $region43: #{tpu_custom_call.1} parent=27 // pred_region
          %s289 = ssub.s32 128, 128
          %290 = vsyncadd %s281, %s289
          %s291 = smul.addr %s23, 128
          %s292 = scalar_lea.hbm %s2, %s291
          %s294 = sshll.u32 %s284, 4
          %s295 = int_to_ptr.vmem [resolvable:$true] %s294
          %297 = dma.vmem_to_hbm [thread:$0]  %s295, 128, %s292, %s281
        $region44: #{tpu_custom_call.1} parent=27 // pred_fallthru
          _
      $region28: #{tpu_custom_call.1} parent=5 // pred_fallthru
        _
      %p298 = scmp.le.s32.totalorder 2, %s14
      // Predicated region
      $region45: #{tpu_custom_call.1} parent=5 // pred_check
        %p299 = pneg %p298
      $region46: #{tpu_custom_call.1} parent=5 // pred_check_branch
        %301 = sbr.rel (%p299) target = $region48
      $region47: #{tpu_custom_call.1} parent=5 // pred_region
        %s302 = ssub.s32 %s14, 2
        // Predicated region
        $region49: #{tpu_custom_call.1} parent=47 // pred_check
          %p303 = pneg %p119
        $region50: #{tpu_custom_call.1} parent=47 // pred_check_branch
          %305 = sbr.rel (%p303) target = $region52
        $region51: #{tpu_custom_call.1} parent=47 // pred_region
          %s306 = sand.u32 %s104, 1
          %s307 = scalar_lea.sflag [#allocation5], %s306
          %s308 = sand.u32 %s104, 1
          %s309 = smul.addr %s308, 8
          %s310 = scalar_lea.vmem [#allocation6], %s309
          %311 = dma.done %s307, 128
        $region52: #{tpu_custom_call.1} parent=47 // pred_fallthru
          _
      $region48: #{tpu_custom_call.1} parent=5 // pred_fallthru
        _
    $region6: #{tpu_custom_call.1} parent=1 // loop_footer
      %s18 = sadd.s32 1, %s14
    $region7: #{tpu_custom_call.1} parent=1 // loop_footer_branch
      %13 = sbr.rel target = $region3
    $region8: #{tpu_custom_call.1} parent=1 // loop_exit
      _
    %312 = vsyncpa [#allocation4], 1
    %s313 = scalar_lea.sflag [#allocation4], 1
    %314 = vsyncpa %s313, 1
    %315 = vsyncpa [#allocation5], 1
    %s316 = scalar_lea.sflag [#allocation5], 1
    %317 = vsyncpa %s316, 1

</llo_original>
